<compile_context>
chip_gen: v5e
topology: v5e:2x2
jax: 0.10.0
libtpu: 0.0.40
codegen_flags: <defaults>
</compile_context>

<pallas_src>
import functools

import jax
import jax.numpy as jnp
from jax import lax
from jax.experimental import pallas as pl
from jax.experimental.pallas import tpu as pltpu


def _bottleneck_kernel(H, W, mm_dtype,
                       x_ref, w1_ref, b1_ref, w2_ref, b2_ref,
                       w3_ref, b3_ref, mask_ref, o_ref):
    """Fused conv1x1+BN+ReLU -> conv3x3+BN+ReLU -> conv1x1+BN -> +id -> ReLU.

    Per grid step (one image), channels-first / flattened-spatial-last:
      x_ref   : (1, Cin, HW)   HW = H*W on the lane axis
      w1_ref  : (Cw, Cin)      BN1 scale already folded in
      w2_ref  : (Cw, 9*Cw)     3x3 taps packed along K, BN2 scale folded in
      w3_ref  : (Cout, Cw)     BN3 scale folded in
      b*_ref  : (C, 1)         folded BN biases (broadcast over lanes)
      mask_ref: (9, 1, HW)     precomputed zero-padding masks, one per tap
      o_ref   : (1, Cout, HW)
    """
    f32 = jnp.float32
    HW = H * W

    xt = x_ref[0]                                       # (Cin, HW)
    xt_f32 = xt.astype(f32)

    # ---- conv1 (1x1) + BN1 bias + ReLU : one dense matmul ----------------
    h1 = jnp.dot(w1_ref[...], xt.astype(mm_dtype),
                 preferred_element_type=f32)             # (Cw, HW)
    h1 = jnp.maximum(h1 + b1_ref[...], 0.0)

    # ---- conv2 (3x3, pad=1) + BN2 bias + ReLU : 9 taps, ONE matmul -------
    # Spatial shifts are lane rolls (XLU slot, free next to the MXU); zero
    # padding is a precomputed 0/1 mask -> one vmul per tap.
    taps = []
    for kh in range(3):
        for kw in range(3):
            d = (kh - 1) * W + (kw - 1)
            shifted = pltpu.roll(h1, (-d) % HW, axis=1) if d != 0 else h1
            taps.append(shifted * mask_ref[kh * 3 + kw])  # (Cw, HW)
    stacked = jnp.concatenate(taps, axis=0)               # (9*Cw, HW)
    h2 = jnp.dot(w2_ref[...], stacked.astype(mm_dtype),
                 preferred_element_type=f32)               # (Cw, HW)
    h2 = jnp.maximum(h2 + b2_ref[...], 0.0)

    # ---- conv3 (1x1) + BN3 bias, residual add, final ReLU ----------------
    y = jnp.dot(w3_ref[...], h2.astype(mm_dtype),
                preferred_element_type=f32)                # (Cout, HW)
    y = y + b3_ref[...]
    o_ref[0] = jnp.maximum(y + xt_f32, 0.0).astype(o_ref.dtype)


def bottleneck_forward(x_nchw, params, *, matmul_dtype=jnp.float32):
    """x_nchw: (B, Cin, H, W) as in the PyTorch module.  Returns NCHW output.

    matmul_dtype: dtype of the MXU operands (use jnp.bfloat16 on v6e/v7x);
    accumulation and all elementwise math stay float32.
    """
    B, Cin, H, W = x_nchw.shape
    w1, s1, b1, w2, s2, b2, w3, s3, b3 = params
    Cw = w1.shape[0]
    Cout = w3.shape[0]
    assert Cout == Cin, "identity add requires matching channels (downsample=None)"
    HW = H * W

    # Free reshape only -- no HBM transpose round trips.
    xr = x_nchw.reshape(B, Cin, HW)

    # Fold BN scales into the conv weights (host-side, zero runtime cost) and
    # pack the nine 3x3 taps along the contraction axis.
    w1p = (w1 * s1).astype(matmul_dtype)                              # (Cw, Cin)
    w2p = jnp.transpose(w2 * s2[None, :, :], (1, 0, 2)) \
             .reshape(Cw, 9 * Cw).astype(matmul_dtype)                # (Cw, 9*Cw)
    w3p = (w3 * s3).astype(matmul_dtype)                              # (Cout, Cw)
    b1f = b1.astype(jnp.float32)
    b2f = b2.astype(jnp.float32)
    b3f = b3.astype(jnp.float32)

    # Precomputed zero-padding masks, one (1, HW) row per 3x3 tap.
    hh = jnp.arange(H)
    ww = jnp.arange(W)
    masks = []
    for kh in range(3):
        for kw in range(3):
            dh, dw = kh - 1, kw - 1
            mh = (hh + dh >= 0) & (hh + dh < H)
            mw = (ww + dw >= 0) & (ww + dw < W)
            masks.append((mh[:, None] & mw[None, :]).reshape(-1))
    mask = jnp.stack(masks).astype(jnp.float32).reshape(9, 1, HW)

    kern = functools.partial(_bottleneck_kernel, H, W, matmul_dtype)

    def resident(a):
        nd = a.ndim
        return pl.BlockSpec(a.shape, lambda b, _nd=nd: (0,) * _nd)

    out = pl.pallas_call(
        kern,
        out_shape=jax.ShapeDtypeStruct((B, Cout, HW), x_nchw.dtype),
        grid_spec=pltpu.PrefetchScalarGridSpec(
            num_scalar_prefetch=0,
            grid=(B,),                               # one image per step
            in_specs=[
                pl.BlockSpec((1, Cin, HW), lambda b: (b, 0, 0)),
                resident(w1p), resident(b1f),
                resident(w2p), resident(b2f),
                resident(w3p), resident(b3f),
                resident(mask),
            ],
            out_specs=pl.BlockSpec((1, Cout, HW), lambda b: (b, 0, 0)),
        ),
        compiler_params=pltpu.CompilerParams(
            dimension_semantics=("parallel",),
            vmem_limit_bytes=32 * 1024 * 1024),
    )(xr, w1p, b1f, w2p, b2f, w3p, b3f, mask)

    return out.reshape(B, Cout, H, W)


def reference_forward(x_nchw, params):
    """Pure-JAX reference mirroring Bottleneck._original_forward (eval-mode BN)."""
    w1, s1, b1, w2, s2, b2, w3, s3, b3 = params
    Cw, Cin = w1.shape
    Cout = w3.shape[0]
    dn = ("NCHW", "OIHW", "NCHW")
    hi = lax.Precision.HIGHEST

    def bn(h, s, b):
        return h * s.reshape(1, -1, 1, 1) + b.reshape(1, -1, 1, 1)

    h = lax.conv_general_dilated(x_nchw, w1.reshape(Cw, Cin, 1, 1), (1, 1),
                                 "VALID", dimension_numbers=dn, precision=hi)
    h = jnp.maximum(bn(h, s1, b1), 0.0)
    w2_oihw = jnp.transpose(w2.reshape(3, 3, Cw, Cw), (2, 3, 0, 1))
    h = lax.conv_general_dilated(h, w2_oihw, (1, 1), ((1, 1), (1, 1)),
                                 dimension_numbers=dn, precision=hi)
    h = jnp.maximum(bn(h, s2, b2), 0.0)
    h = lax.conv_general_dilated(h, w3.reshape(Cout, Cw, 1, 1), (1, 1),
                                 "VALID", dimension_numbers=dn, precision=hi)
    h = bn(h, s3, b3)
    return jnp.maximum(h + x_nchw, 0.0)


if __name__ == "__main__":
    key = jax.random.PRNGKey(0)

    # Module hyper-params: Bottleneck(inplanes=16, planes=4) -> width=4, out=16.
    B, inplanes, H, W = 2, 16, 8, 8
    planes, expansion, base_width, groups = 4, 4, 64, 1
    width = int(planes * (base_width / 64.0)) * groups   # 4
    cout = planes * expansion                            # 16 == inplanes
    eps = 1e-5

    ks = jax.random.split(key, 16)
    x_nchw = jax.random.normal(ks[0], (B, inplanes, H, W), jnp.float32)

    def bn_affine(kg, kb, km, kv, C):
        gamma = 1.0 + 0.1 * jax.random.normal(kg, (C, 1), jnp.float32)
        beta = 0.1 * jax.random.normal(kb, (C, 1), jnp.float32)
        mean = 0.1 * jax.random.normal(km, (C, 1), jnp.float32)
        var = jax.random.uniform(kv, (C, 1), jnp.float32, minval=0.5, maxval=1.5)
        scale = gamma * lax.rsqrt(var + eps)
        bias = beta - mean * scale
        return scale, bias

    # Weights in (out_ch, in_ch) layout; 3x3 weight as (kh*3+kw, out_ch, in_ch).
    w1 = 0.2 * jax.random.normal(ks[1], (width, inplanes), jnp.float32)
    s1, b1 = bn_affine(ks[2], ks[3], ks[4], ks[5], width)
    w2 = 0.2 * jax.random.normal(ks[6], (9, width, width), jnp.float32)
    s2, b2 = bn_affine(ks[7], ks[8], ks[9], ks[10], width)
    w3 = 0.2 * jax.random.normal(ks[11], (cout, width), jnp.float32)
    s3, b3 = bn_affine(ks[12], ks[13], ks[14], ks[15], cout)

    params = (w1, s1, b1, w2, s2, b2, w3, s3, b3)

    out = bottleneck_forward(x_nchw, params)
    out = jax.block_until_ready(out)

    ref = reference_forward(x_nchw, params)
    if not bool(jnp.allclose(out, ref, rtol=1e-3, atol=1e-3)):
        raise AssertionError(
            "Pallas kernel mismatch vs reference; max abs err = "
            f"{float(jnp.max(jnp.abs(out - ref)))}")

    print("KERNEL_OK")
</pallas_src>

<mosaic_0001>
module attributes {stable_mosaic.version = 11 : i64} {
  func.func @_bottleneck_kernel(%arg0: i32, %arg1: memref<1x16x64xf32, #tpu.memory_space<vmem>>, %arg2: memref<4x16xf32, #tpu.memory_space<vmem>>, %arg3: memref<4x1xf32, #tpu.memory_space<vmem>>, %arg4: memref<4x36xf32, #tpu.memory_space<vmem>>, %arg5: memref<4x1xf32, #tpu.memory_space<vmem>>, %arg6: memref<16x4xf32, #tpu.memory_space<vmem>>, %arg7: memref<16x1xf32, #tpu.memory_space<vmem>>, %arg8: memref<9x1x64xf32, #tpu.memory_space<vmem>>, %arg9: memref<1x16x64xf32, #tpu.memory_space<vmem>>) attributes {dimension_semantics = [#tpu.dimension_semantics<parallel>], iteration_bounds = array<i64: 2>, scalar_prefetch = 0 : i64, scratch_operands = 0 : i64, tpu.core_type = #tpu.core_type<tc>, window_params = [{transform_indices = @transform_0, window_bounds = array<i64: 1, 16, 64>}, {pipeline_mode = #tpu.pipeline_mode<synchronous>, transform_indices = @transform_1, window_bounds = array<i64: 4, 16>}, {pipeline_mode = #tpu.pipeline_mode<synchronous>, transform_indices = @transform_2, window_bounds = array<i64: 4, 1>}, {pipeline_mode = #tpu.pipeline_mode<synchronous>, transform_indices = @transform_3, window_bounds = array<i64: 4, 36>}, {pipeline_mode = #tpu.pipeline_mode<synchronous>, transform_indices = @transform_4, window_bounds = array<i64: 4, 1>}, {pipeline_mode = #tpu.pipeline_mode<synchronous>, transform_indices = @transform_5, window_bounds = array<i64: 16, 4>}, {pipeline_mode = #tpu.pipeline_mode<synchronous>, transform_indices = @transform_6, window_bounds = array<i64: 16, 1>}, {pipeline_mode = #tpu.pipeline_mode<synchronous>, transform_indices = @transform_7, window_bounds = array<i64: 9, 1, 64>}, {transform_indices = @transform_8, window_bounds = array<i64: 1, 16, 64>}]} {
    %c0 = arith.constant 0 : index
    %c0_0 = arith.constant 0 : index
    %c0_1 = arith.constant 0 : index
    %0 = vector.load %arg1[%c0, %c0_0, %c0_1] : memref<1x16x64xf32, #tpu.memory_space<vmem>>, vector<1x16x64xf32>
    %1 = vector.shape_cast %0 : vector<1x16x64xf32> to vector<16x64xf32>
    %c0_2 = arith.constant 0 : index
    %c0_3 = arith.constant 0 : index
    %2 = vector.load %arg2[%c0_2, %c0_3] : memref<4x16xf32, #tpu.memory_space<vmem>>, vector<4x16xf32>
    %cst = arith.constant dense<0.000000e+00> : vector<4x64xf32>
    %3 = tpu.matmul %2, %1, %cst {dimension_numbers = #tpu.dot_dimension_numbers<[1], [0], [0], [1], [0, 0, 1, 1], [], []>} : vector<4x16xf32>, vector<16x64xf32>, vector<4x64xf32> -> vector<4x64xf32>
    %c0_4 = arith.constant 0 : index
    %c0_5 = arith.constant 0 : index
    %4 = vector.load %arg3[%c0_4, %c0_5] : memref<4x1xf32, #tpu.memory_space<vmem>>, vector<4x1xf32>
    %5 = vector.broadcast %4 : vector<4x1xf32> to vector<4x64xf32>
    %6 = arith.addf %3, %5 : vector<4x64xf32>
    %cst_6 = arith.constant 0.000000e+00 : f32
    %7 = vector.broadcast %cst_6 : f32 to vector<4x64xf32>
    %8 = arith.maximumf %6, %7 : vector<4x64xf32>
    %c9_i32 = arith.constant 9 : i32
    %9 = tpu.dynamic_rotate %8 by %c9_i32 dim 1 : vector<4x64xf32>, i32 -> vector<4x64xf32>
    %c0_7 = arith.constant 0 : index
    %c0_8 = arith.constant 0 : index
    %c0_9 = arith.constant 0 : index
    %10 = vector.load %arg8[%c0_7, %c0_8, %c0_9] : memref<9x1x64xf32, #tpu.memory_space<vmem>>, vector<1x1x64xf32>
    %11 = vector.shape_cast %10 : vector<1x1x64xf32> to vector<1x64xf32>
    %12 = vector.broadcast %11 : vector<1x64xf32> to vector<4x64xf32>
    %13 = arith.mulf %9, %12 : vector<4x64xf32>
    %c8_i32 = arith.constant 8 : i32
    %14 = tpu.dynamic_rotate %8 by %c8_i32 dim 1 : vector<4x64xf32>, i32 -> vector<4x64xf32>
    %c1 = arith.constant 1 : index
    %c0_10 = arith.constant 0 : index
    %c0_11 = arith.constant 0 : index
    %15 = vector.load %arg8[%c1, %c0_10, %c0_11] : memref<9x1x64xf32, #tpu.memory_space<vmem>>, vector<1x1x64xf32>
    %16 = vector.shape_cast %15 : vector<1x1x64xf32> to vector<1x64xf32>
    %17 = vector.broadcast %16 : vector<1x64xf32> to vector<4x64xf32>
    %18 = arith.mulf %14, %17 : vector<4x64xf32>
    %c7_i32 = arith.constant 7 : i32
    %19 = tpu.dynamic_rotate %8 by %c7_i32 dim 1 : vector<4x64xf32>, i32 -> vector<4x64xf32>
    %c2 = arith.constant 2 : index
    %c0_12 = arith.constant 0 : index
    %c0_13 = arith.constant 0 : index
    %20 = vector.load %arg8[%c2, %c0_12, %c0_13] : memref<9x1x64xf32, #tpu.memory_space<vmem>>, vector<1x1x64xf32>
    %21 = vector.shape_cast %20 : vector<1x1x64xf32> to vector<1x64xf32>
    %22 = vector.broadcast %21 : vector<1x64xf32> to vector<4x64xf32>
    %23 = arith.mulf %19, %22 : vector<4x64xf32>
    %c1_i32 = arith.constant 1 : i32
    %24 = tpu.dynamic_rotate %8 by %c1_i32 dim 1 : vector<4x64xf32>, i32 -> vector<4x64xf32>
    %c3 = arith.constant 3 : index
    %c0_14 = arith.constant 0 : index
    %c0_15 = arith.constant 0 : index
    %25 = vector.load %arg8[%c3, %c0_14, %c0_15] : memref<9x1x64xf32, #tpu.memory_space<vmem>>, vector<1x1x64xf32>
    %26 = vector.shape_cast %25 : vector<1x1x64xf32> to vector<1x64xf32>
    %27 = vector.broadcast %26 : vector<1x64xf32> to vector<4x64xf32>
    %28 = arith.mulf %24, %27 : vector<4x64xf32>
    %c4 = arith.constant 4 : index
    %c0_16 = arith.constant 0 : index
    %c0_17 = arith.constant 0 : index
    %29 = vector.load %arg8[%c4, %c0_16, %c0_17] : memref<9x1x64xf32, #tpu.memory_space<vmem>>, vector<1x1x64xf32>
    %30 = vector.shape_cast %29 : vector<1x1x64xf32> to vector<1x64xf32>
    %31 = vector.broadcast %30 : vector<1x64xf32> to vector<4x64xf32>
    %32 = arith.mulf %8, %31 : vector<4x64xf32>
    %c63_i32 = arith.constant 63 : i32
    %33 = tpu.dynamic_rotate %8 by %c63_i32 dim 1 : vector<4x64xf32>, i32 -> vector<4x64xf32>
    %c5 = arith.constant 5 : index
    %c0_18 = arith.constant 0 : index
    %c0_19 = arith.constant 0 : index
    %34 = vector.load %arg8[%c5, %c0_18, %c0_19] : memref<9x1x64xf32, #tpu.memory_space<vmem>>, vector<1x1x64xf32>
    %35 = vector.shape_cast %34 : vector<1x1x64xf32> to vector<1x64xf32>
    %36 = vector.broadcast %35 : vector<1x64xf32> to vector<4x64xf32>
    %37 = arith.mulf %33, %36 : vector<4x64xf32>
    %c57_i32 = arith.constant 57 : i32
    %38 = tpu.dynamic_rotate %8 by %c57_i32 dim 1 : vector<4x64xf32>, i32 -> vector<4x64xf32>
    %c6 = arith.constant 6 : index
    %c0_20 = arith.constant 0 : index
    %c0_21 = arith.constant 0 : index
    %39 = vector.load %arg8[%c6, %c0_20, %c0_21] : memref<9x1x64xf32, #tpu.memory_space<vmem>>, vector<1x1x64xf32>
    %40 = vector.shape_cast %39 : vector<1x1x64xf32> to vector<1x64xf32>
    %41 = vector.broadcast %40 : vector<1x64xf32> to vector<4x64xf32>
    %42 = arith.mulf %38, %41 : vector<4x64xf32>
    %c56_i32 = arith.constant 56 : i32
    %43 = tpu.dynamic_rotate %8 by %c56_i32 dim 1 : vector<4x64xf32>, i32 -> vector<4x64xf32>
    %c7 = arith.constant 7 : index
    %c0_22 = arith.constant 0 : index
    %c0_23 = arith.constant 0 : index
    %44 = vector.load %arg8[%c7, %c0_22, %c0_23] : memref<9x1x64xf32, #tpu.memory_space<vmem>>, vector<1x1x64xf32>
    %45 = vector.shape_cast %44 : vector<1x1x64xf32> to vector<1x64xf32>
    %46 = vector.broadcast %45 : vector<1x64xf32> to vector<4x64xf32>
    %47 = arith.mulf %43, %46 : vector<4x64xf32>
    %c55_i32 = arith.constant 55 : i32
    %48 = tpu.dynamic_rotate %8 by %c55_i32 dim 1 : vector<4x64xf32>, i32 -> vector<4x64xf32>
    %c8 = arith.constant 8 : index
    %c0_24 = arith.constant 0 : index
    %c0_25 = arith.constant 0 : index
    %49 = vector.load %arg8[%c8, %c0_24, %c0_25] : memref<9x1x64xf32, #tpu.memory_space<vmem>>, vector<1x1x64xf32>
    %50 = vector.shape_cast %49 : vector<1x1x64xf32> to vector<1x64xf32>
    %51 = vector.broadcast %50 : vector<1x64xf32> to vector<4x64xf32>
    %52 = arith.mulf %48, %51 : vector<4x64xf32>
    %53 = tpu.concatenate %13, %18, %23, %28, %32, %37, %42, %47, %52 in 0 : vector<4x64xf32>, vector<4x64xf32>, vector<4x64xf32>, vector<4x64xf32>, vector<4x64xf32>, vector<4x64xf32>, vector<4x64xf32>, vector<4x64xf32>, vector<4x64xf32> -> vector<36x64xf32>
    %c0_26 = arith.constant 0 : index
    %c0_27 = arith.constant 0 : index
    %54 = vector.load %arg4[%c0_26, %c0_27] : memref<4x36xf32, #tpu.memory_space<vmem>>, vector<4x36xf32>
    %cst_28 = arith.constant dense<0.000000e+00> : vector<4x64xf32>
    %55 = tpu.matmul %54, %53, %cst_28 {dimension_numbers = #tpu.dot_dimension_numbers<[1], [0], [0], [1], [0, 0, 1, 1], [], []>} : vector<4x36xf32>, vector<36x64xf32>, vector<4x64xf32> -> vector<4x64xf32>
    %c0_29 = arith.constant 0 : index
    %c0_30 = arith.constant 0 : index
    %56 = vector.load %arg5[%c0_29, %c0_30] : memref<4x1xf32, #tpu.memory_space<vmem>>, vector<4x1xf32>
    %57 = vector.broadcast %56 : vector<4x1xf32> to vector<4x64xf32>
    %58 = arith.addf %55, %57 : vector<4x64xf32>
    %cst_31 = arith.constant 0.000000e+00 : f32
    %59 = vector.broadcast %cst_31 : f32 to vector<4x64xf32>
    %60 = arith.maximumf %58, %59 : vector<4x64xf32>
    %c0_32 = arith.constant 0 : index
    %c0_33 = arith.constant 0 : index
    %61 = vector.load %arg6[%c0_32, %c0_33] : memref<16x4xf32, #tpu.memory_space<vmem>>, vector<16x4xf32>
    %cst_34 = arith.constant dense<0.000000e+00> : vector<16x64xf32>
    %62 = tpu.matmul %61, %60, %cst_34 {dimension_numbers = #tpu.dot_dimension_numbers<[1], [0], [0], [1], [0, 0, 1, 1], [], []>} : vector<16x4xf32>, vector<4x64xf32>, vector<16x64xf32> -> vector<16x64xf32>
    %c0_35 = arith.constant 0 : index
    %c0_36 = arith.constant 0 : index
    %63 = vector.load %arg7[%c0_35, %c0_36] : memref<16x1xf32, #tpu.memory_space<vmem>>, vector<16x1xf32>
    %64 = vector.broadcast %63 : vector<16x1xf32> to vector<16x64xf32>
    %65 = arith.addf %62, %64 : vector<16x64xf32>
    %66 = arith.addf %65, %1 : vector<16x64xf32>
    %cst_37 = arith.constant 0.000000e+00 : f32
    %67 = vector.broadcast %cst_37 : f32 to vector<16x64xf32>
    %68 = arith.maximumf %66, %67 : vector<16x64xf32>
    %c0_38 = arith.constant 0 : index
    %c0_39 = arith.constant 0 : index
    %c0_40 = arith.constant 0 : index
    %69 = vector.load %arg9[%c0_38, %c0_39, %c0_40] : memref<1x16x64xf32, #tpu.memory_space<vmem>>, vector<1x16x64xf32>
    %70 = vector.shape_cast %69 : vector<1x16x64xf32> to vector<16x64xf32>
    %71 = vector.shape_cast %68 : vector<16x64xf32> to vector<1x16x64xf32>
    tpu.vector_store %arg9[%c0_38, %c0_39, %c0_40], %71 {strides = array<i32>} : memref<1x16x64xf32, #tpu.memory_space<vmem>>, vector<1x16x64xf32>,
    return
  }
  func.func @transform_0(%arg0: i32) -> (i32, i32, i32) {
    %c0_i32 = arith.constant 0 : i32
    %c0_i32_0 = arith.constant 0 : i32
    %c0_i32_1 = arith.constant 0 : i32
    return %arg0, %c0_i32, %c0_i32_0 : i32, i32, i32
  }
  func.func @transform_1(%arg0: i32) -> (i32, i32) {
    %c0_i32 = arith.constant 0 : i32
    %c0_i32_0 = arith.constant 0 : i32
    %c0_i32_1 = arith.constant 0 : i32
    return %c0_i32, %c0_i32_0 : i32, i32
  }
  func.func @transform_2(%arg0: i32) -> (i32, i32) {
    %c0_i32 = arith.constant 0 : i32
    %c0_i32_0 = arith.constant 0 : i32
    %c0_i32_1 = arith.constant 0 : i32
    return %c0_i32, %c0_i32_0 : i32, i32
  }
  func.func @transform_3(%arg0: i32) -> (i32, i32) {
    %c0_i32 = arith.constant 0 : i32
    %c0_i32_0 = arith.constant 0 : i32
    %c0_i32_1 = arith.constant 0 : i32
    return %c0_i32, %c0_i32_0 : i32, i32
  }
  func.func @transform_4(%arg0: i32) -> (i32, i32) {
    %c0_i32 = arith.constant 0 : i32
    %c0_i32_0 = arith.constant 0 : i32
    %c0_i32_1 = arith.constant 0 : i32
    return %c0_i32, %c0_i32_0 : i32, i32
  }
  func.func @transform_5(%arg0: i32) -> (i32, i32) {
    %c0_i32 = arith.constant 0 : i32
    %c0_i32_0 = arith.constant 0 : i32
    %c0_i32_1 = arith.constant 0 : i32
    return %c0_i32, %c0_i32_0 : i32, i32
  }
  func.func @transform_6(%arg0: i32) -> (i32, i32) {
    %c0_i32 = arith.constant 0 : i32
    %c0_i32_0 = arith.constant 0 : i32
    %c0_i32_1 = arith.constant 0 : i32
    return %c0_i32, %c0_i32_0 : i32, i32
  }
  func.func @transform_7(%arg0: i32) -> (i32, i32, i32) {
    %c0_i32 = arith.constant 0 : i32
    %c0_i32_0 = arith.constant 0 : i32
    %c0_i32_1 = arith.constant 0 : i32
    %c0_i32_2 = arith.constant 0 : i32
    return %c0_i32, %c0_i32_0, %c0_i32_1 : i32, i32, i32
  }
  func.func @transform_8(%arg0: i32) -> (i32, i32, i32) {
    %c0_i32 = arith.constant 0 : i32
    %c0_i32_0 = arith.constant 0 : i32
    %c0_i32_1 = arith.constant 0 : i32
    return %arg0, %c0_i32, %c0_i32_0 : i32, i32, i32
  }
}

</mosaic_0001>

<llo_original>
// kernel: tpu_custom_call.1
$region0: #{tpu_custom_call.1}
  #allocation0 [shape = 'u32[]', space=smem, size = 0x4, offset = 0x4, fixed_abs, tag = 'smem constant byte address 0x4 - core index']
  #allocation1 [shape = 'u32[72,128]{1,0:T(1,128)}', space=vmem, size = 0x9000, scoped, tag = 'internal scratch']
  %s0 = inlined_call_operand.vmem [shape: f32[2,16,64], index: 0, kind: input, shape index: {}]
  %s1 = inlined_call_operand.hbm [shape: f32[4,16], index: 1, kind: input, shape index: {}]
  %s2 = inlined_call_operand.vmem [shape: f32[4,1], index: 2, kind: input, shape index: {}]
  %s3 = inlined_call_operand.hbm [shape: f32[4,36], index: 3, kind: input, shape index: {}]
  %s4 = inlined_call_operand.vmem [shape: f32[4,1], index: 4, kind: input, shape index: {}]
  %s5 = inlined_call_operand.vmem [shape: f32[16,4], index: 5, kind: input, shape index: {}]
  %s6 = inlined_call_operand.vmem [shape: f32[16,1], index: 6, kind: input, shape index: {}]
  %s7 = inlined_call_operand.vmem [shape: f32[9,1,64], index: 7, kind: input, shape index: {}]
  %s8 = inlined_call_operand.hbm [shape: f32[2,16,64], index: 8, kind: output, shape index: {}]
  %s9 = sld [smem:[#allocation0]]
  $region73: #{tpu_custom_call.1} parent=0
    _
  %s11 = ssub.s32 1, %s9
  %s12 = scalar_select 0, %s11, %s9
  $region1: #{tpu_custom_call.1} parent=0
    #allocation2 [shape = 'u8[2048]{0}', space=vmem, size = 0x800, scoped, tag = 'input window, operand 1, single buffered']
    #allocation3 [shape = 's32[2]{0}', space=sflag, size = 0x8, scoped, tag = 'scoped memory for tpu_custom_call.1']
    #allocation4 [shape = 's32[2]{0}', space=sflag, size = 0x8, scoped, tag = 'scoped memory for tpu_custom_call.1']
    #allocation5 [shape = 'u8[2048]{0}', space=vmem, size = 0x800, scoped, tag = 'input window, operand 3, single buffered']
    #allocation6 [shape = 's32[1]{0}', space=sflag, size = 0x4, scoped, tag = 'scoped memory for tpu_custom_call.1']
    #allocation7 [shape = 'u8[16384]{0}', space=vmem, size = 0x4000, scoped, tag = 'output window, operand 0']
    %13 = vsyncpa [#allocation3], 0
    %14 = vsyncpa [#allocation6], 0
    %15 = vsyncpa [#allocation4], 0
    %s16 = scalar_lea.sflag [#allocation4], 1
    %17 = vsyncpa %s16, 0
    loop: start=0, step=1, limit=4
    $region2: #{tpu_custom_call.1} parent=1 // loop_pre_header
      _
    $region3: #{tpu_custom_call.1} parent=1 // loop_header
      %s19 = sphi 0, %s23
      %p20 = scmp.ge.s32.totalorder %s19, 4
      %s29 = sphi 0, %s31
      %s32 = sphi 0, %s29
      %s33 = sphi 0, %s32
      %s49 = sphi 0, %s33
      %s53 = sphi 0, %s53
      %s55 = sphi 0, %s53
      %s56 = sphi 0, %s55
      %s70 = sphi 0, %s56
      %s74 = sphi 0, %s74
      %s76 = sphi 0, %s74
      %s77 = sphi 0, %s76
      %s91 = sphi 0, %s77
      %s95 = sphi 0, %s95
      %s97 = sphi 0, %s95
      %s98 = sphi 0, %s97
      %s112 = sphi 0, %s98
      %s116 = sphi 0, %s116
      %s118 = sphi 0, %s116
      %s119 = sphi 0, %s118
      %s133 = sphi 0, %s119
      %s137 = sphi 0, %s137
      %s139 = sphi 0, %s137
      %s140 = sphi 0, %s139
      %s154 = sphi 0, %s140
      %s158 = sphi 0, %s158
      %s160 = sphi 0, %s158
      %s161 = sphi 0, %s160
      %s175 = sphi 0, %s161
      %s179 = sphi 0, %s179
      %s181 = sphi 0, %s179
      %s182 = sphi 0, %s181
      %s196 = sphi 0, %s182
      %s202 = sphi 0, %s204
      %s205 = sphi 0, %s202
      %s206 = sphi 0, %s205
      %s222 = sphi 0, %s206
    $region4: #{tpu_custom_call.1} parent=1 // loop_header_branch
      %22 = sbr.rel (%p20) target = $region8
    $region5: #{tpu_custom_call.1} parent=1 // loop_body
      %s24 = ssub.s32 %s19, 1
      %s25 = ssub.s32 %s19, 2
      %s26 = sadd.s32 %s19, 1
      %s27 = ssub.s32 %s19, %s26
      %p28 = scmp.eq.s32.totalorder %s27, 0
      %s30 = sadd.s32 %s29, 1
      %s31 = scalar_select %p28, %s29, %s30
      %p34 = pneg %p28
      %p35 = scmp.eq.s32.totalorder %s19, 1
      %p36 = por %p34, %p35
      %p37 = scmp.ne.s32.totalorder %s29, %s32
      %p38 = scmp.eq.s32.totalorder %s19, 0
      %p39 = por %p37, %p38
      %p40 = scmp.ne.s32.totalorder %s29, %s32
      %p41 = scmp.eq.s32.totalorder %s24, 1
      %p42 = por %p40, %p41
      %p43 = scmp.ne.s32.totalorder %s32, %s33
      %p44 = scmp.eq.s32.totalorder %s24, 0
      %p45 = por %p43, %p44
      %p46 = scmp.ne.s32.totalorder %s32, %s33
      %p47 = scmp.eq.s32.totalorder %s25, 1
      %p48 = por %p46, %p47
      %p50 = scmp.ne.s32.totalorder %s33, %s49
      %p51 = scmp.eq.s32.totalorder %s25, 0
      %p52 = por %p50, %p51
      %s54 = sadd.s32 %s53, 1
      %p57 = scmp.eq.s32.totalorder %s19, 1
      %p58 = scmp.ne.s32.totalorder %s53, %s55
      %p59 = scmp.eq.s32.totalorder %s19, 0
      %p60 = por %p58, %p59
      %p61 = scmp.ne.s32.totalorder %s53, %s55
      %p62 = scmp.eq.s32.totalorder %s24, 1
      %p63 = por %p61, %p62
      %p64 = scmp.ne.s32.totalorder %s55, %s56
      %p65 = scmp.eq.s32.totalorder %s24, 0
      %p66 = por %p64, %p65
      %p67 = scmp.ne.s32.totalorder %s55, %s56
      %p68 = scmp.eq.s32.totalorder %s25, 1
      %p69 = por %p67, %p68
      %p71 = scmp.ne.s32.totalorder %s56, %s70
      %p72 = scmp.eq.s32.totalorder %s25, 0
      %p73 = por %p71, %p72
      %s75 = sadd.s32 %s74, 1
      %p78 = scmp.eq.s32.totalorder %s19, 1
      %p79 = scmp.ne.s32.totalorder %s74, %s76
      %p80 = scmp.eq.s32.totalorder %s19, 0
      %p81 = por %p79, %p80
      %p82 = scmp.ne.s32.totalorder %s74, %s76
      %p83 = scmp.eq.s32.totalorder %s24, 1
      %p84 = por %p82, %p83
      %p85 = scmp.ne.s32.totalorder %s76, %s77
      %p86 = scmp.eq.s32.totalorder %s24, 0
      %p87 = por %p85, %p86
      %p88 = scmp.ne.s32.totalorder %s76, %s77
      %p89 = scmp.eq.s32.totalorder %s25, 1
      %p90 = por %p88, %p89
      %p92 = scmp.ne.s32.totalorder %s77, %s91
      %p93 = scmp.eq.s32.totalorder %s25, 0
      %p94 = por %p92, %p93
      %s96 = sadd.s32 %s95, 1
      %p99 = scmp.eq.s32.totalorder %s19, 1
      %p100 = scmp.ne.s32.totalorder %s95, %s97
      %p101 = scmp.eq.s32.totalorder %s19, 0
      %p102 = por %p100, %p101
      %p103 = scmp.ne.s32.totalorder %s95, %s97
      %p104 = scmp.eq.s32.totalorder %s24, 1
      %p105 = por %p103, %p104
      %p106 = scmp.ne.s32.totalorder %s97, %s98
      %p107 = scmp.eq.s32.totalorder %s24, 0
      %p108 = por %p106, %p107
      %p109 = scmp.ne.s32.totalorder %s97, %s98
      %p110 = scmp.eq.s32.totalorder %s25, 1
      %p111 = por %p109, %p110
      %p113 = scmp.ne.s32.totalorder %s98, %s112
      %p114 = scmp.eq.s32.totalorder %s25, 0
      %p115 = por %p113, %p114
      %s117 = sadd.s32 %s116, 1
      %p120 = scmp.eq.s32.totalorder %s19, 1
      %p121 = scmp.ne.s32.totalorder %s116, %s118
      %p122 = scmp.eq.s32.totalorder %s19, 0
      %p123 = por %p121, %p122
      %p124 = scmp.ne.s32.totalorder %s116, %s118
      %p125 = scmp.eq.s32.totalorder %s24, 1
      %p126 = por %p124, %p125
      %p127 = scmp.ne.s32.totalorder %s118, %s119
      %p128 = scmp.eq.s32.totalorder %s24, 0
      %p129 = por %p127, %p128
      %p130 = scmp.ne.s32.totalorder %s118, %s119
      %p131 = scmp.eq.s32.totalorder %s25, 1
      %p132 = por %p130, %p131
      %p134 = scmp.ne.s32.totalorder %s119, %s133
      %p135 = scmp.eq.s32.totalorder %s25, 0
      %p136 = por %p134, %p135
      %s138 = sadd.s32 %s137, 1
      %p141 = scmp.eq.s32.totalorder %s19, 1
      %p142 = scmp.ne.s32.totalorder %s137, %s139
      %p143 = scmp.eq.s32.totalorder %s19, 0
      %p144 = por %p142, %p143
      %p145 = scmp.ne.s32.totalorder %s137, %s139
      %p146 = scmp.eq.s32.totalorder %s24, 1
      %p147 = por %p145, %p146
      %p148 = scmp.ne.s32.totalorder %s139, %s140
      %p149 = scmp.eq.s32.totalorder %s24, 0
      %p150 = por %p148, %p149
      %p151 = scmp.ne.s32.totalorder %s139, %s140
      %p152 = scmp.eq.s32.totalorder %s25, 1
      %p153 = por %p151, %p152
      %p155 = scmp.ne.s32.totalorder %s140, %s154
      %p156 = scmp.eq.s32.totalorder %s25, 0
      %p157 = por %p155, %p156
      %s159 = sadd.s32 %s158, 1
      %p162 = scmp.eq.s32.totalorder %s19, 1
      %p163 = scmp.ne.s32.totalorder %s158, %s160
      %p164 = scmp.eq.s32.totalorder %s19, 0
      %p165 = por %p163, %p164
      %p166 = scmp.ne.s32.totalorder %s158, %s160
      %p167 = scmp.eq.s32.totalorder %s24, 1
      %p168 = por %p166, %p167
      %p169 = scmp.ne.s32.totalorder %s160, %s161
      %p170 = scmp.eq.s32.totalorder %s24, 0
      %p171 = por %p169, %p170
      %p172 = scmp.ne.s32.totalorder %s160, %s161
      %p173 = scmp.eq.s32.totalorder %s25, 1
      %p174 = por %p172, %p173
      %p176 = scmp.ne.s32.totalorder %s161, %s175
      %p177 = scmp.eq.s32.totalorder %s25, 0
      %p178 = por %p176, %p177
      %s180 = sadd.s32 %s179, 1
      %p183 = scmp.eq.s32.totalorder %s19, 1
      %p184 = scmp.ne.s32.totalorder %s179, %s181
      %p185 = scmp.eq.s32.totalorder %s19, 0
      %p186 = por %p184, %p185
      %p187 = scmp.ne.s32.totalorder %s179, %s181
      %p188 = scmp.eq.s32.totalorder %s24, 1
      %p189 = por %p187, %p188
      %p190 = scmp.ne.s32.totalorder %s181, %s182
      %p191 = scmp.eq.s32.totalorder %s24, 0
      %p192 = por %p190, %p191
      %p193 = scmp.ne.s32.totalorder %s181, %s182
      %p194 = scmp.eq.s32.totalorder %s25, 1
      %p195 = por %p193, %p194
      %p197 = scmp.ne.s32.totalorder %s182, %s196
      %p198 = scmp.eq.s32.totalorder %s25, 0
      %p199 = por %p197, %p198
      %s200 = ssub.s32 %s19, %s26
      %p201 = scmp.eq.s32.totalorder %s200, 0
      %s203 = sadd.s32 %s202, 1
      %s204 = scalar_select %p201, %s202, %s203
      %p207 = pneg %p201
      %p208 = scmp.eq.s32.totalorder %s19, 1
      %p209 = por %p207, %p208
      %p210 = scmp.ne.s32.totalorder %s202, %s205
      %p211 = scmp.eq.s32.totalorder %s19, 0
      %p212 = por %p210, %p211
      %p213 = scmp.ne.s32.totalorder %s202, %s205
      %p214 = scmp.eq.s32.totalorder %s24, 1
      %p215 = por %p213, %p214
      %p216 = scmp.ne.s32.totalorder %s205, %s206
      %p217 = scmp.eq.s32.totalorder %s24, 0
      %p218 = por %p216, %p217
      %p219 = scmp.ne.s32.totalorder %s205, %s206
      %p220 = scmp.eq.s32.totalorder %s25, 1
      %p221 = por %p219, %p220
      %p223 = scmp.ne.s32.totalorder %s206, %s222
      %p224 = scmp.eq.s32.totalorder %s25, 0
      %p225 = por %p223, %p224
      %p226 = scmp.le.s32.totalorder 1, %s19
      %p227 = scmp.lt.s32.totalorder %s19, 3
      %p228 = pnand %p226, %p227
      %p229 = pneg %p228
      // Predicated region
      $region9: #{tpu_custom_call.1} parent=5 // pred_check
        _
      $region10: #{tpu_custom_call.1} parent=5 // pred_check_branch
        %231 = sbr.rel (%p228) target = $region12
      $region11: #{tpu_custom_call.1} parent=5 // pred_region
        %s232 = ssub.s32 %s19, 1
        // Predicated region
        $region13: #{tpu_custom_call.1} parent=11 // pred_check
          %p233 = pneg %p66
        $region14: #{tpu_custom_call.1} parent=11 // pred_check_branch
          %235 = sbr.rel (%p233) target = $region16
        $region15: #{tpu_custom_call.1} parent=11 // pred_region
          %237 = vsyncadd [#allocation3], 0
          %s239 = sshll.u32 %s1, 4
          %s240 = int_to_ptr.hbm [resolvable:$true] %s239
          %s241 = sshll.u32 [#allocation2], 4
          %s242 = int_to_ptr.vmem [resolvable:$true] %s241
          %244 = dma.hbm_to_vmem [thread:$0]  %s240, 64, %s242, [#allocation3]
        $region16: #{tpu_custom_call.1} parent=11 // pred_fallthru
          _
        // Predicated region
        $region17: #{tpu_custom_call.1} parent=11 // pred_check
          %p245 = pneg %p87
        $region18: #{tpu_custom_call.1} parent=11 // pred_check_branch
          %247 = sbr.rel (%p245) target = $region20
        $region19: #{tpu_custom_call.1} parent=11 // pred_region
          _
        $region20: #{tpu_custom_call.1} parent=11 // pred_fallthru
          _
        // Predicated region
        $region21: #{tpu_custom_call.1} parent=11 // pred_check
          %p248 = pneg %p108
        $region22: #{tpu_custom_call.1} parent=11 // pred_check_branch
          %250 = sbr.rel (%p248) target = $region24
        $region23: #{tpu_custom_call.1} parent=11 // pred_region
          %252 = vsyncadd [#allocation6], 0
          %s254 = sshll.u32 %s3, 4
          %s255 = int_to_ptr.hbm [resolvable:$true] %s254
          %s256 = sshll.u32 [#allocation5], 4
          %s257 = int_to_ptr.vmem [resolvable:$true] %s256
          %259 = dma.hbm_to_vmem [thread:$0]  %s255, 64, %s257, [#allocation6]
        $region24: #{tpu_custom_call.1} parent=11 // pred_fallthru
          _
        // Predicated region
        $region25: #{tpu_custom_call.1} parent=11 // pred_check
          %p260 = pneg %p129
        $region26: #{tpu_custom_call.1} parent=11 // pred_check_branch
          %262 = sbr.rel (%p260) target = $region28
        $region27: #{tpu_custom_call.1} parent=11 // pred_region
          _
        $region28: #{tpu_custom_call.1} parent=11 // pred_fallthru
          _
        // Predicated region
        $region29: #{tpu_custom_call.1} parent=11 // pred_check
          %p263 = pneg %p150
        $region30: #{tpu_custom_call.1} parent=11 // pred_check_branch
          %265 = sbr.rel (%p263) target = $region32
        $region31: #{tpu_custom_call.1} parent=11 // pred_region
          _
        $region32: #{tpu_custom_call.1} parent=11 // pred_fallthru
          _
        // Predicated region
        $region33: #{tpu_custom_call.1} parent=11 // pred_check
          %p266 = pneg %p171
        $region34: #{tpu_custom_call.1} parent=11 // pred_check_branch
          %268 = sbr.rel (%p266) target = $region36
        $region35: #{tpu_custom_call.1} parent=11 // pred_region
          _
        $region36: #{tpu_custom_call.1} parent=11 // pred_fallthru
          _
        // Predicated region
        $region37: #{tpu_custom_call.1} parent=11 // pred_check
          %p269 = pneg %p192
        $region38: #{tpu_custom_call.1} parent=11 // pred_check_branch
          %271 = sbr.rel (%p269) target = $region40
        $region39: #{tpu_custom_call.1} parent=11 // pred_region
          _
        $region40: #{tpu_custom_call.1} parent=11 // pred_fallthru
          _
      $region12: #{tpu_custom_call.1} parent=5 // pred_fallthru
        _
      %p272 = scmp.lt.s32.totalorder %s19, 2
      // Predicated region
      $region41: #{tpu_custom_call.1} parent=5 // pred_check
        %p273 = pneg %p272
      $region42: #{tpu_custom_call.1} parent=5 // pred_check_branch
        %275 = sbr.rel (%p273) target = $region44
      $region43: #{tpu_custom_call.1} parent=5 // pred_region
        // Predicated region
        $region45: #{tpu_custom_call.1} parent=43 // pred_check
          %p276 = pneg %p39
        $region46: #{tpu_custom_call.1} parent=43 // pred_check_branch
          %278 = sbr.rel (%p276) target = $region48
        $region47: #{tpu_custom_call.1} parent=43 // pred_region
          %p279 = scmp.lt.s32.totalorder %s19, 1
          %s280 = scalar_select %p279, %s19, 1
          %s281 = smul.addr %s280, 2
          %s282 = smul.addr %s281, 8
          %s283 = scalar_lea.vmem %s0, %s282
        $region48: #{tpu_custom_call.1} parent=43 // pred_fallthru
          _
      $region44: #{tpu_custom_call.1} parent=5 // pred_fallthru
        _
      %p284 = scmp.le.s32.totalorder 1, %s19
      %p285 = scmp.lt.s32.totalorder %s19, 3
      %p286 = pnand %p284, %p285
      %p287 = pneg %p286
      // Predicated region
      $region49: #{tpu_custom_call.1} parent=5 // pred_check
        _
      $region50: #{tpu_custom_call.1} parent=5 // pred_check_branch
        %289 = sbr.rel (%p286) target = $region52
      $region51: #{tpu_custom_call.1} parent=5 // pred_region
        %s290 = ssub.s32 %s19, 1
        // Predicated region
        $region53: #{tpu_custom_call.1} parent=51 // pred_check
          %p291 = pneg %p66
        $region54: #{tpu_custom_call.1} parent=51 // pred_check_branch
          %293 = sbr.rel (%p291) target = $region56
        $region55: #{tpu_custom_call.1} parent=51 // pred_region
          %295 = dma.done [#allocation3], 64
        $region56: #{tpu_custom_call.1} parent=51 // pred_fallthru
          _
        // Predicated region
        $region57: #{tpu_custom_call.1} parent=51 // pred_check
          %p296 = pneg %p108
        $region58: #{tpu_custom_call.1} parent=51 // pred_check_branch
          %298 = sbr.rel (%p296) target = $region60
        $region59: #{tpu_custom_call.1} parent=51 // pred_region
          %300 = dma.done [#allocation6], 64
        $region60: #{tpu_custom_call.1} parent=51 // pred_fallthru
          _
        %p301 = scmp.lt.s32.totalorder %s24, 1
        %s302 = scalar_select %p301, %s24, 1
        %s303 = smul.addr %s302, 2
        %s304 = smul.addr %s303, 8
        %s305 = scalar_lea.vmem %s0, %s304
        %p306 = pneg %p45
        %p307 = pneg %p42
        %p308 = pneg %p66
        %p309 = pneg %p63
        %p310 = pneg %p87
        %p311 = pneg %p84
        %p312 = pneg %p108
        %p313 = pneg %p105
        %p314 = pneg %p129
        %p315 = pneg %p126
        %p316 = pneg %p150
        %p317 = pneg %p147
        %p318 = pneg %p171
        %p319 = pneg %p168
        %p320 = pneg %p192
        %p321 = pneg %p189
        %p322 = pneg %p218
        %p323 = pneg %p215
        %s324 = sand.u32 %s205, 1
        %s325 = scalar_lea.sflag [#allocation4], %s324
        %s326 = sand.u32 %s205, 1
        %s327 = smul.addr %s326, 16
        %s328 = scalar_lea.vmem [#allocation7], %s327
        %p329 = scmp.lt.s32.totalorder %s24, 1
        %s330 = scalar_select %p329, %s24, 1
        %s331 = smul.addr %s330, 2
        %s332 = smul.addr %s331, 8
        %s333 = scalar_lea.vmem %s0, %s332
        %v334 = vld [vmem:[%s333] sm:$0xff]
        %v335 = vld [vmem:[%s333 + $0x8] sm:$0xff]
        %v336 = vld [vmem:[#allocation2] sm:$0xf]
        %v337 = vld [vmem:[%s2] sm:$0xf]
        %339 = vset.pattern.permute.xlu0 0
        %340 = vperm.xlu0 %339, %v337
        %v341 = vpop.permute.xlu0 %340
        %vm343 = vcmask 130048
        %v345 = vsel %vm343, %v336, 0
        %347 = vmatpush.msra.mxu0 0.0
        %348 = vmatpush.msra.mxu0 0.0
        %349 = vmatpush.msra.mxu0 0.0
        %350 = vmatpush.msra.mxu0 0.0
        %351 = vmatpush.msra.mxu0 0.0
        %352 = vmatpush.msra.mxu0 0.0
        %353 = vmatpush.msra.mxu0 0.0
        %354 = vmatpush.msra.mxu0 0.0
        %355 = vmatpush.msra.mxu0 0.0
        %356 = vmatpush.msra.mxu0 0.0
        %357 = vmatpush.msra.mxu0 0.0
        %358 = vmatpush.msra.mxu0 0.0
        %359 = vmatpush.msra.mxu0 0.0
        %360 = vmatpush.msra.mxu0 0.0
        %361 = vmatpush.msra.mxu0 %v335
        %362 = vmatpush.msra.mxu0 %v334
        %363 = vmatmul.f32.gmra.mxu0 %v345
        %v364 = vpop.f32.mrf.mxu0
        %v365 = vadd.f32 %v341, %v364
        %366 = vdwg.mxu0
        %v367 = vmax.f32 %v365, 0.0
        %vm368 = vcmask 1048064
        %369 = vrot.lane.b32.xlu0 %v367, 64
        %v370 = vpop.permute.xlu0 %369
        %v371 = vsel %vm368, %v370, %v367
        %372 = vrot.lane.b32.xlu0 %v371, 64
        %v373 = vpop.permute.xlu0 %372
        %v374 = vsel %vm368, %v373, %v367
        %v375 = vld [vmem:[%s7] sm:$0x1]
        %v377 = vperm.slane %v375, 0
        %378 = vrot.lane.b32.xlu0 %v377, 55
        %v379 = vpop.permute.xlu0 %378
        %v381 = vmul.f32 %v374, %v379
        %s382 = scalar_lea.vmem %s7, 1
        %v383 = vld [vmem:[%s382] sm:$0x1]
        %v385 = vperm.slane %v383, 0
        %386 = vrot.lane.b32.xlu0 %v385, 56
        %v387 = vpop.permute.xlu0 %386
        %v389 = vmul.f32 %v374, %v387
        %s390 = scalar_lea.vmem %s7, 2
        %v391 = vld [vmem:[%s390] sm:$0x1]
        %v393 = vperm.slane %v391, 0
        %394 = vrot.lane.b32.xlu0 %v393, 57
        %v395 = vpop.permute.xlu0 %394
        %v397 = vmul.f32 %v374, %v395
        %s398 = scalar_lea.vmem %s7, 3
        %v399 = vld [vmem:[%s398] sm:$0x1]
        %v401 = vperm.slane %v399, 0
        %402 = vrot.lane.b32.xlu0 %v401, 63
        %v403 = vpop.permute.xlu0 %402
        %v405 = vmul.f32 %v374, %v403
        %s406 = scalar_lea.vmem %s7, 4
        %v407 = vld [vmem:[%s406] sm:$0x1]
        %v409 = vperm.slane %v407, 0
        %v411 = vmul.f32 %v367, %v409
        %s412 = scalar_lea.vmem %s7, 5
        %v413 = vld [vmem:[%s412] sm:$0x1]
        %v415 = vperm.slane %v413, 0
        %416 = vrot.lane.b32.xlu0 %v415, 1
        %v417 = vpop.permute.xlu0 %416
        %v419 = vmul.f32 %v374, %v417
        %s420 = scalar_lea.vmem %s7, 6
        %v421 = vld [vmem:[%s420] sm:$0x1]
        %v423 = vperm.slane %v421, 0
        %424 = vrot.lane.b32.xlu0 %v423, 7
        %v425 = vpop.permute.xlu0 %424
        %v427 = vmul.f32 %v374, %v425
        %s428 = scalar_lea.vmem %s7, 7
        %v429 = vld [vmem:[%s428] sm:$0x1]
        %v431 = vperm.slane %v429, 0
        %432 = vrot.lane.b32.xlu0 %v431, 8
        %v433 = vpop.permute.xlu0 %432
        %v435 = vmul.f32 %v374, %v433
        %s436 = scalar_lea.vmem %s7, 8
        %v437 = vld [vmem:[%s436] sm:$0x1]
        %v439 = vperm.slane %v437, 0
        %440 = vrot.lane.b32.xlu0 %v439, 9
        %v441 = vpop.permute.xlu0 %440
        %v443 = vmul.f32 %v374, %v441
        %v445 = vrot.slane %v389, 4
        %446 = vrot.lane.b32.xlu0 %v445, 127
        %v447 = vpop.permute.xlu0 %446
        %450 = vrot.lane.b32.xlu0 %v397, 126
        %v451 = vpop.permute.xlu0 %450
        %v454 = vrot.slane %v405, 4
        %455 = vrot.lane.b32.xlu0 %v454, 120
        %v456 = vpop.permute.xlu0 %455
        %459 = vrot.lane.b32.xlu0 %v411, 55
        %v460 = vpop.permute.xlu0 %459
        %v463 = vrot.slane %v419, 4
        %464 = vrot.lane.b32.xlu0 %v463, 54
        %v465 = vpop.permute.xlu0 %464
        %468 = vrot.lane.b32.xlu0 %v427, 48
        %v469 = vpop.permute.xlu0 %468
        %v472 = vrot.slane %v435, 4
        %473 = vrot.lane.b32.xlu0 %v472, 47
        %v474 = vpop.permute.xlu0 %473
        %477 = vrot.lane.b32.xlu0 %v443, 46
        %v478 = vpop.permute.xlu0 %477
        %vm479 = vcmask 1043456
        %v480 = vsel %vm479, %v381, %v447
        %v481 = vsel %vm479, %v451, %v456
        %v482 = vsel %vm479, %v460, %v465
        %v483 = vsel %vm479, %v469, %v474
        %v484 = vld [vmem:[#allocation5] sm:$0xf]
        %v485 = vld [vmem:[%s4] sm:$0xf]
        %487 = vset.pattern.permute.xlu0 0
        %488 = vperm.xlu0 %487, %v485
        %v489 = vpop.permute.xlu0 %488
        %495 = vrot.lane.b32.xlu0 %v480, 73
        %v496 = vpop.permute.xlu0 %495
        %497 = vrot.lane.b32.xlu0 %v481, 73
        %v498 = vpop.permute.xlu0 %497
        %499 = vrot.lane.b32.xlu0 %v482, 73
        %v500 = vpop.permute.xlu0 %499
        %501 = vrot.lane.b32.xlu0 %v483, 73
        %v502 = vpop.permute.xlu0 %501
        %503 = vrot.lane.b32.xlu0 %v478, 73
        %v504 = vpop.permute.xlu0 %503
        %vm509 = vcmask 293888
        %v511 = vsel %vm509, %v484, 0
        %v513 = vsel %vm479, %v504, 0
        %515 = vmatpush.msra.mxu0 0.0
        %516 = vmatpush.msra.mxu0 0.0
        %517 = vmatpush.msra.mxu0 0.0
        %518 = vmatpush.msra.mxu0 0.0
        %519 = vmatpush.msra.mxu0 0.0
        %520 = vmatpush.msra.mxu0 0.0
        %521 = vmatpush.msra.mxu0 0.0
        %522 = vmatpush.msra.mxu0 0.0
        %523 = vmatpush.msra.mxu0 0.0
        %524 = vmatpush.msra.mxu0 0.0
        %525 = vmatpush.msra.mxu0 0.0
        %526 = vmatpush.msra.mxu0 %v513
        %527 = vmatpush.msra.mxu0 %v502
        %528 = vmatpush.msra.mxu0 %v500
        %529 = vmatpush.msra.mxu0 %v498
        %530 = vmatpush.msra.mxu0 %v496
        %531 = vmatmul.f32.gmra.mxu0 %v511
        %v532 = vpop.f32.mrf.mxu0
        %v533 = vadd.f32 %v489, %v532
        %534 = vdwg.mxu0
        %v535 = vmax.f32 %v533, 0.0
        %v536 = vld [vmem:[%s5] sm:$0xff]
        %v537 = vld [vmem:[%s5 + $0x8] sm:$0xff]
        %v538 = vld [vmem:[%s6] sm:$0xff]
        %v539 = vld [vmem:[%s6 + $0x8] sm:$0xff]
        %541 = vset.pattern.permute.xlu0 0
        %542 = vperm.xlu0 %541, %v538
        %v543 = vpop.permute.xlu0 %542
        %546 = vset.pattern.permute.xlu0 0
        %547 = vperm.xlu0 %546, %v539
        %v548 = vpop.permute.xlu0 %547
        %vm550 = vcmask 31744
        %v552 = vsel %vm550, %v536, 0
        %v555 = vsel %vm550, %v537, 0
        %v558 = vsel %vm479, %v535, 0
        %560 = vmatpush.msra.mxu0 0.0
        %561 = vmatpush.msra.mxu0 0.0
        %562 = vmatpush.msra.mxu0 0.0
        %563 = vmatpush.msra.mxu0 0.0
        %564 = vmatpush.msra.mxu0 0.0
        %565 = vmatpush.msra.mxu0 0.0
        %566 = vmatpush.msra.mxu0 0.0
        %567 = vmatpush.msra.mxu0 0.0
        %568 = vmatpush.msra.mxu0 0.0
        %569 = vmatpush.msra.mxu0 0.0
        %570 = vmatpush.msra.mxu0 0.0
        %571 = vmatpush.msra.mxu0 0.0
        %572 = vmatpush.msra.mxu0 0.0
        %573 = vmatpush.msra.mxu0 0.0
        %574 = vmatpush.msra.mxu0 0.0
        %575 = vmatpush.msra.mxu0 %v558
        %576 = vmatmul.f32.gmra.mxu0 %v552
        %v577 = vpop.f32.mrf.mxu0
        %v578 = vadd.f32 %v543, %v577
        %579 = vmatmul.f32.gmra.mxu0 %v555
        %v580 = vpop.f32.mrf.mxu0
        %v581 = vadd.f32 %v548, %v580
        %582 = vdwg.mxu0
        %v583 = vadd.f32 %v578, %v334
        %v584 = vadd.f32 %v581, %v335
        %v585 = vmax.f32 %v583, 0.0
        %v586 = vmax.f32 %v584, 0.0
        %vm587 = vcmask 523264
        %588 = vst.msk [vmem:[%s328] sm:$0xff] %vm587, %v585
        %589 = vst.msk [vmem:[%s328 + $0x8] sm:$0xff] %vm587, %v586
        %s590 = sand.u32 %s205, 1
        %s591 = scalar_lea.sflag [#allocation4], %s590
        %s592 = sand.u32 %s205, 1
        %s593 = smul.addr %s592, 16
        %s594 = scalar_lea.vmem [#allocation7], %s593
        // Predicated region
        $region61: #{tpu_custom_call.1} parent=51 // pred_check
          %p595 = pneg %p215
        $region62: #{tpu_custom_call.1} parent=51 // pred_check_branch
          %597 = sbr.rel (%p595) target = $region64
        $region63: #{tpu_custom_call.1} parent=51 // pred_region
          %599 = vsyncadd %s591, 0
          %s600 = smul.addr %s24, 2
          %s601 = smul.addr %s600, 8
          %s602 = scalar_lea.hbm %s8, %s601
          %s603 = sshll.u32 %s594, 4
          %s604 = int_to_ptr.vmem [resolvable:$true] %s603
          %s605 = sshll.u32 %s602, 4
          %s606 = int_to_ptr.hbm [resolvable:$true] %s605
          %611 = dma.vmem_to_hbm [thread:$0]  %s604, 256, %s606, %s591, 128, 128, 8
        $region64: #{tpu_custom_call.1} parent=51 // pred_fallthru
          _
      $region52: #{tpu_custom_call.1} parent=5 // pred_fallthru
        _
      %p612 = scmp.le.s32.totalorder 2, %s19
      // Predicated region
      $region65: #{tpu_custom_call.1} parent=5 // pred_check
        %p613 = pneg %p612
      $region66: #{tpu_custom_call.1} parent=5 // pred_check_branch
        %615 = sbr.rel (%p613) target = $region68
      $region67: #{tpu_custom_call.1} parent=5 // pred_region
        %s616 = ssub.s32 %s19, 2
        // Predicated region
        $region69: #{tpu_custom_call.1} parent=67 // pred_check
          %p617 = pneg %p221
        $region70: #{tpu_custom_call.1} parent=67 // pred_check_branch
          %619 = sbr.rel (%p617) target = $region72
        $region71: #{tpu_custom_call.1} parent=67 // pred_region
          %s620 = sand.u32 %s206, 1
          %s621 = scalar_lea.sflag [#allocation4], %s620
          %s622 = sand.u32 %s206, 1
          %s623 = smul.addr %s622, 16
          %s624 = scalar_lea.vmem [#allocation7], %s623
          %626 = dma.done %s621, 256
        $region72: #{tpu_custom_call.1} parent=67 // pred_fallthru
          _
      $region68: #{tpu_custom_call.1} parent=5 // pred_fallthru
        _
    $region6: #{tpu_custom_call.1} parent=1 // loop_footer
      %s23 = sadd.s32 1, %s19
    $region7: #{tpu_custom_call.1} parent=1 // loop_footer_branch
      %18 = sbr.rel target = $region3
    $region8: #{tpu_custom_call.1} parent=1 // loop_exit
      _
    %627 = vsyncpa [#allocation3], 1
    %s628 = scalar_lea.sflag [#allocation3], 1
    %629 = vsyncpa %s628, 1
    %630 = vsyncpa [#allocation6], 1
    %631 = vsyncpa [#allocation4], 1
    %s632 = scalar_lea.sflag [#allocation4], 1
    %633 = vsyncpa %s632, 1

</llo_original>
